<compile_context>
chip_gen: v6e
topology: v6e:2x2x1
jax: 0.10.0
libtpu: 0.0.40
codegen_flags: <defaults>
</compile_context>

<pallas_src>
import functools

import jax
import jax.numpy as jnp
import numpy as np
from jax import lax
from jax.experimental import pallas as pl
from jax.experimental.pallas import tpu as pltpu


# ---------------- tiling policy ----------------

_MN_TILES = (256, 128)                       # output-tile edge preferences
_K_TILES = (4096, 2048, 1024, 512, 256, 128)
_STREAM_VMEM_BUDGET = 20 << 20               # double-buffered feature streams
_VMEM_LIMIT_BYTES = 28 << 20                 # explicit scoped-VMEM limit


def _pick_mn(M):
    for t in _MN_TILES:
        if M % t == 0:
            return t
    return M  # full extent (always legal); M = batch*channels stays small


def _pick_k(K, tm, itemsize, n_streams):
    """(padded_K, tk): largest k-tile whose double-buffered streams fit budget."""
    fits = [t for t in _K_TILES
            if n_streams * 2 * tm * t * itemsize <= _STREAM_VMEM_BUDGET]
    if not fits:
        fits = [_K_TILES[-1]]
    for t in fits:                       # exact divisor -> no padding
        if K % t == 0:
            return K, t
    waste_cap = max(K // 16, 128)
    for t in fits:                       # pad K, keep waste <= ~6%
        Kp = -(-K // t) * t
        if Kp - K <= waste_cap:
            return Kp, t
    t = fits[-1]
    return -(-K // t) * t, t


def _pad_k(feats, Kp):
    K = feats.shape[1]
    if Kp == K:
        return feats
    return jnp.pad(feats, ((0, 0), (0, Kp - K)))  # zero cols: no effect on F F^T


def _params(dims):
    return pltpu.CompilerParams(dimension_semantics=dims,
                                vmem_limit_bytes=_VMEM_LIMIT_BYTES)


# ---------------- in-kernel helpers ----------------

def _partial_is_dense(tm, tn):
    # Tile re-blockable into (8, 128) chunks -> true per-lane partials.
    return tm % 8 == 0 and tn % 128 == 0


def _sq_err_partial(acc_ref, tgt_ref, inv_mk):
    """(8, 128) squared-error partial for one gram tile.

    Dense tiles: elements sum to sum((G - T)^2), accumulated per (8, 128)
    chunk straight from the refs (lane-aligned VPU adds, no full-tile diff,
    no full cross-lane reduce).  Small tiles: every element holds the full
    tile sum and the wrapper reads [0, 0].
    """
    tm, tn = acc_ref.shape
    if _partial_is_dense(tm, tn):
        part = jnp.zeros((8, 128), jnp.float32)
        for r in range(0, tm, 8):
            for c in range(0, tn, 128):
                d = (acc_ref[r:r + 8, c:c + 128] * inv_mk
                     - tgt_ref[r:r + 8, c:c + 128].astype(jnp.float32))
                part = part + d * d
        return part
    diff = acc_ref[...] * inv_mk - tgt_ref[...].astype(jnp.float32)
    return jnp.broadcast_to(jnp.sum(diff * diff), (8, 128))


# ---------------- Pallas kernels ----------------

def _gram_diag_kernel(f_ref, g_ref, acc_ref, *, inv_mk, k_axis):
    """Gram tile with a single streamed operand (LHS == RHS), accumulated
    over grid axis `k_axis`.  Used when the whole gram fits one tile."""
    k = pl.program_id(k_axis)

    @pl.when(k == 0)
    def _():
        acc_ref[...] = jnp.zeros_like(acc_ref)

    f = f_ref[...]
    # Contract last dim vs last dim: no explicit transpose of the VMEM tile.
    acc_ref[...] += lax.dot_general(
        f, f, dimension_numbers=(((1,), (1,)), ((), ())),
        preferred_element_type=jnp.float32)

    @pl.when(k == pl.num_programs(k_axis) - 1)
    def _():
        g_ref[...] = (acc_ref[...] * inv_mk).astype(g_ref.dtype)


def _gram_full_kernel(fi_ref, fj_ref, g_ref, acc_ref, *, inv_mk):
    """General (i, j, k) gram tile with two streamed operands (gi > 1)."""
    k = pl.program_id(2)

    @pl.when(k == 0)
    def _():
        acc_ref[...] = jnp.zeros_like(acc_ref)

    acc_ref[...] += lax.dot_general(
        fi_ref[...], fj_ref[...],
        dimension_numbers=(((1,), (1,)), ((), ())),
        preferred_element_type=jnp.float32)

    @pl.when(k == pl.num_programs(2) - 1)
    def _():
        g_ref[...] = (acc_ref[...] * inv_mk).astype(g_ref.dtype)


def _mse_diag_kernel(f_ref, tgt_ref, part_ref, acc_ref, *, inv_mk):
    """Fused gram + squared-error partial, single output tile (gi == 1).
    G never round-trips HBM."""
    k = pl.program_id(0)

    @pl.when(k == 0)
    def _():
        acc_ref[...] = jnp.zeros_like(acc_ref)

    f = f_ref[...]
    acc_ref[...] += lax.dot_general(
        f, f, dimension_numbers=(((1,), (1,)), ((), ())),
        preferred_element_type=jnp.float32)

    @pl.when(k == pl.num_programs(0) - 1)
    def _():
        part_ref[...] = _sq_err_partial(acc_ref, tgt_ref, inv_mk)


def _mse_sym_kernel(ij_ref, fi_ref, fj_ref, tgt_ref, part_ref, acc_ref, *, inv_mk):
    """Fused gram + squared-error over upper-triangle (i <= j) tiles only;
    off-diagonal tiles are weighted by 2 (gram and target are symmetric)."""
    t = pl.program_id(0)
    k = pl.program_id(1)

    @pl.when(k == 0)
    def _():
        acc_ref[...] = jnp.zeros_like(acc_ref)

    acc_ref[...] += lax.dot_general(
        fi_ref[...], fj_ref[...],
        dimension_numbers=(((1,), (1,)), ((), ())),
        preferred_element_type=jnp.float32)

    @pl.when(k == pl.num_programs(1) - 1)
    def _():
        w = ij_ref[2, t].astype(jnp.float32)   # 1 on-diagonal, 2 off-diagonal
        part_ref[...] = w * _sq_err_partial(acc_ref, tgt_ref, inv_mk)


# ---------------- wrappers ----------------

def gram_matrix(x):
    """x: (a, b, c, d) NCHW -> G: (a*b, a*b), G = F F^T / (a*b*c*d)."""
    a, b, c, d = x.shape
    M, K = a * b, c * d
    feats = x.reshape(M, K)
    inv_mk = 1.0 / float(M * K)
    itemsize = x.dtype.itemsize
    tm = _pick_mn(M)
    gi = M // tm

    if gi == 1:
        # Single output tile: stream F once, use it as both MXU operands.
        Kp, tk = _pick_k(K, tm, itemsize, n_streams=1)
        feats = _pad_k(feats, Kp)
        gk = Kp // tk
        kernel = functools.partial(_gram_diag_kernel, inv_mk=inv_mk, k_axis=0)
        return pl.pallas_call(
            kernel,
            out_shape=jax.ShapeDtypeStruct((M, M), jnp.float32),
            grid_spec=pltpu.PrefetchScalarGridSpec(
                num_scalar_prefetch=0,
                grid=(gk,),
                in_specs=[pl.BlockSpec((tm, tk), lambda k: (0, k))],
                out_specs=pl.BlockSpec((M, M), lambda k: (0, 0)),
                scratch_shapes=[pltpu.VMEM((tm, tm), jnp.float32)],
            ),
            compiler_params=_params(("arbitrary",)),
        )(feats)

    # gi > 1: full (i, j, k) grid (the full symmetric matrix must be written,
    # and a BlockSpec can't write two mirrored tiles per step).  Only runs
    # once per StyleLoss construction, so the extra reads are acceptable.
    Kp, tk = _pick_k(K, tm, itemsize, n_streams=2)
    feats = _pad_k(feats, Kp)
    gk = Kp // tk
    kernel = functools.partial(_gram_full_kernel, inv_mk=inv_mk)
    return pl.pallas_call(
        kernel,
        out_shape=jax.ShapeDtypeStruct((M, M), jnp.float32),
        grid_spec=pltpu.PrefetchScalarGridSpec(
            num_scalar_prefetch=0,
            grid=(gi, gi, gk),
            in_specs=[
                pl.BlockSpec((tm, tk), lambda i, j, k: (i, k)),
                pl.BlockSpec((tm, tk), lambda i, j, k: (j, k)),
            ],
            out_specs=pl.BlockSpec((tm, tm), lambda i, j, k: (i, j)),
            scratch_shapes=[pltpu.VMEM((tm, tm), jnp.float32)],
        ),
        compiler_params=_params(("parallel", "parallel", "arbitrary")),
    )(feats, feats)


def style_loss(x, target_gram):
    """mean((gram_matrix(x) - target_gram)^2), fused so the full gram never
    round-trips HBM (except tiny per-core partials on the dual-TC path)."""
    a, b, c, d = x.shape
    M, K = a * b, c * d
    feats = x.reshape(M, K)
    inv_mk = 1.0 / float(M * K)
    inv_mm = 1.0 / float(M * M)
    itemsize = x.dtype.itemsize
    tm = _pick_mn(M)
    gi = M // tm

    if gi == 1:
        Kp, tk = _pick_k(K, tm, itemsize, n_streams=1)
        feats = _pad_k(feats, Kp)
        gk = Kp // tk

        if gk >= 2 and gk % 2 == 0:
            # Dual-TensorCore (v7x) path: split the K reduction across a
            # leading parallel axis of 2; each core emits a partial gram
            # (<= tm x tm f32, tiny) and the wrapper combines + applies MSE.
            gk2 = gk // 2
            kernel = functools.partial(_gram_diag_kernel, inv_mk=inv_mk,
                                       k_axis=1)
            partial_g = pl.pallas_call(
                kernel,
                out_shape=jax.ShapeDtypeStruct((2, M, M), jnp.float32),
                grid_spec=pltpu.PrefetchScalarGridSpec(
                    num_scalar_prefetch=0,
                    grid=(2, gk2),
                    in_specs=[pl.BlockSpec((tm, tk),
                                           lambda cc, k: (0, cc * gk2 + k))],
                    out_specs=pl.BlockSpec((None, M, M),
                                           lambda cc, k: (cc, 0, 0)),
                    scratch_shapes=[pltpu.VMEM((tm, tm), jnp.float32)],
                ),
                compiler_params=_params(("parallel", "arbitrary")),
            )(feats)
            diff = (partial_g[0] + partial_g[1]) - target_gram.astype(jnp.float32)
            return jnp.sum(diff * diff) * inv_mm

        # Single-tile fused path (gk == 1 or odd): G stays in VMEM.
        kernel = functools.partial(_mse_diag_kernel, inv_mk=inv_mk)
        partials = pl.pallas_call(
            kernel,
            out_shape=jax.ShapeDtypeStruct((8, 128), jnp.float32),
            grid_spec=pltpu.PrefetchScalarGridSpec(
                num_scalar_prefetch=0,
                grid=(gk,),
                in_specs=[
                    pl.BlockSpec((tm, tk), lambda k: (0, k)),
                    pl.BlockSpec((M, M), lambda k: (0, 0)),   # fetched once
                ],
                out_specs=pl.BlockSpec((8, 128), lambda k: (0, 0)),
                scratch_shapes=[pltpu.VMEM((tm, tm), jnp.float32)],
            ),
            compiler_params=_params(("arbitrary",)),
        )(feats, target_gram)
        tile_sum = (jnp.sum(partials) if _partial_is_dense(M, M)
                    else partials[0, 0])
        return tile_sum * inv_mm

    # gi > 1: only upper-triangle (i <= j) tiles; off-diagonal partials x2.
    Kp, tk = _pick_k(K, tm, itemsize, n_streams=2)
    feats = _pad_k(feats, Kp)
    gk = Kp // tk

    ii, jj = np.triu_indices(gi)
    ijw = jnp.asarray(
        np.stack([ii, jj, np.where(ii == jj, 1, 2)]).astype(np.int32))
    ntiles = int(ii.size)

    kernel = functools.partial(_mse_sym_kernel, inv_mk=inv_mk)
    partials = pl.pallas_call(
        kernel,
        out_shape=jax.ShapeDtypeStruct((ntiles, 8, 128), jnp.float32),
        grid_spec=pltpu.PrefetchScalarGridSpec(
            num_scalar_prefetch=1,
            grid=(ntiles, gk),
            in_specs=[
                pl.BlockSpec((tm, tk), lambda t, k, ij: (ij[0, t], k)),
                pl.BlockSpec((tm, tk), lambda t, k, ij: (ij[1, t], k)),
                pl.BlockSpec((tm, tm), lambda t, k, ij: (ij[0, t], ij[1, t])),
            ],
            out_specs=pl.BlockSpec((None, 8, 128), lambda t, k, ij: (t, 0, 0)),
            scratch_shapes=[pltpu.VMEM((tm, tm), jnp.float32)],
        ),
        compiler_params=_params(("parallel", "arbitrary")),
    )(ijw, feats, feats, target_gram)

    if _partial_is_dense(tm, tm):
        return jnp.sum(partials) * inv_mm
    return jnp.sum(partials[:, 0, 0]) * inv_mm


class StyleLoss:
    """Pallas equivalent of the PyTorch StyleLoss module."""

    def __init__(self, target_feature):
        self.target = jax.lax.stop_gradient(gram_matrix(target_feature))
        self.loss = None

    def __call__(self, x):
        # TODO(synk): self.loss as a Python-object side effect mirrors the
        # PyTorch module but won't compose with jax.jit/grad of the whole model.
        self.loss = style_loss(x, self.target)
        return x  # forward returns input unchanged


# ---------------- demo / self-check ----------------

if __name__ == "__main__":
    key = jax.random.PRNGKey(0)
    k1, k2, k3, k4, k5, k6 = jax.random.split(key, 6)

    def gram_ref(t):
        a, b, c, d = t.shape
        f = t.reshape(a * b, c * d)
        return (f @ f.T) / (a * b * c * d)

    def loss_ref(t, tgt):
        return jnp.mean((gram_ref(t) - gram_ref(tgt)) ** 2)

    # 1) Spec shape: batch=2, channels=4, spatial=16 -> single-tile fused path.
    target_feature = jax.random.normal(k1, (2, 4, 16, 16), dtype=jnp.float32)
    x = jax.random.normal(k2, (2, 4, 16, 16), dtype=jnp.float32)
    module = StyleLoss(target_feature)
    out = module(x)
    jax.block_until_ready(out)
    jax.block_until_ready(module.loss)
    assert np.allclose(np.asarray(out), np.asarray(x)), "forward must return input"
    assert np.allclose(np.asarray(module.target), np.asarray(gram_ref(target_feature)),
                       rtol=1e-4, atol=1e-5), "target gram mismatch vs reference"
    assert np.allclose(np.asarray(module.loss), np.asarray(loss_ref(x, target_feature)),
                       rtol=1e-5, atol=1e-6), "loss mismatch vs reference"

    # 2) Multi-tile case: exercises the full-grid gram and the symmetric
    #    upper-triangle fused-MSE path (gi = 2).
    tf2 = jax.random.normal(k3, (2, 256, 16, 16), dtype=jnp.float32)
    x2 = jax.random.normal(k4, (2, 256, 16, 16), dtype=jnp.float32)
    m2 = StyleLoss(tf2)
    m2(x2)
    jax.block_until_ready(m2.loss)
    assert np.allclose(np.asarray(m2.target), np.asarray(gram_ref(tf2)),
                       rtol=1e-4, atol=1e-7), "multi-tile target gram mismatch"
    assert np.allclose(np.asarray(m2.loss), np.asarray(loss_ref(x2, tf2)),
                       rtol=1e-4, atol=1e-9), "symmetric-path loss mismatch"

    # 3) Non-divisible K (padding) + even K-grid: exercises the dual-TC
    #    split-reduction path (partial grams combined in the wrapper).
    tf3 = jax.random.normal(k5, (1, 8, 60, 130), dtype=jnp.float32)
    x3 = jax.random.normal(k6, (1, 8, 60, 130), dtype=jnp.float32)
    m3 = StyleLoss(tf3)
    m3(x3)
    jax.block_until_ready(m3.loss)
    assert np.allclose(np.asarray(m3.target), np.asarray(gram_ref(tf3)),
                       rtol=1e-4, atol=1e-7), "padded-K target gram mismatch"
    assert np.allclose(np.asarray(m3.loss), np.asarray(loss_ref(x3, tf3)),
                       rtol=1e-4, atol=1e-9), "split-K loss mismatch"

    print("KERNEL_OK")
</pallas_src>

<mosaic_0001>
module attributes {stable_mosaic.version = 11 : i64} {
  func.func @_gram_diag_kernel(%arg0: i32, %arg1: memref<8x256xf32, #tpu.memory_space<vmem>>, %arg2: memref<8x8xf32, #tpu.memory_space<vmem>>, %arg3: memref<8x8xf32, #tpu.memory_space<vmem>>) attributes {dimension_semantics = [#tpu.dimension_semantics<arbitrary>], iteration_bounds = array<i64: 1>, scalar_prefetch = 0 : i64, scratch_operands = 1 : i64, tpu.core_type = #tpu.core_type<tc>, window_params = [{transform_indices = @transform_0, window_bounds = array<i64: 8, 256>}, {pipeline_mode = #tpu.pipeline_mode<synchronous>, transform_indices = @transform_1, window_bounds = array<i64: 8, 8>}]} {
    %c0_i32 = arith.constant 0 : i32
    %0 = arith.cmpi eq, %arg0, %c0_i32 : i32
    %1 = arith.extui %0 : i1 to i32
    %c0_i32_0 = arith.constant 0 : i32
    %2 = arith.cmpi ne, %1, %c0_i32_0 : i32
    scf.if %2 {
      %cst_8 = arith.constant 0.000000e+00 : f32
      %11 = vector.broadcast %cst_8 : f32 to vector<8x8xf32>
      %c0_9 = arith.constant 0 : index
      %c0_10 = arith.constant 0 : index
      %12 = vector.load %arg3[%c0_9, %c0_10] : memref<8x8xf32, #tpu.memory_space<vmem>>, vector<8x8xf32>
      tpu.vector_store %arg3[%c0_9, %c0_10], %11 {strides = array<i32>} : memref<8x8xf32, #tpu.memory_space<vmem>>, vector<8x8xf32>,
    } else {
    }
    %c0 = arith.constant 0 : index
    %c0_1 = arith.constant 0 : index
    %3 = vector.load %arg1[%c0, %c0_1] : memref<8x256xf32, #tpu.memory_space<vmem>>, vector<8x256xf32>
    %c0_2 = arith.constant 0 : index
    %c0_3 = arith.constant 0 : index
    %4 = vector.load %arg3[%c0_2, %c0_3] : memref<8x8xf32, #tpu.memory_space<vmem>>, vector<8x8xf32>
    %cst = arith.constant dense<0.000000e+00> : vector<8x8xf32>
    %5 = tpu.matmul %3, %3, %cst {dimension_numbers = #tpu.dot_dimension_numbers<[1], [1], [0], [0], [0, 0, 1, 0], [], []>} : vector<8x256xf32>, vector<8x256xf32>, vector<8x8xf32> -> vector<8x8xf32>
    %6 = arith.addf %4, %5 : vector<8x8xf32>
    %c0_4 = arith.constant 0 : index
    %c0_5 = arith.constant 0 : index
    %7 = vector.load %arg3[%c0_4, %c0_5] : memref<8x8xf32, #tpu.memory_space<vmem>>, vector<8x8xf32>
    tpu.vector_store %arg3[%c0_4, %c0_5], %6 {strides = array<i32>} : memref<8x8xf32, #tpu.memory_space<vmem>>, vector<8x8xf32>,
    %c0_i32_6 = arith.constant 0 : i32
    %8 = arith.cmpi eq, %arg0, %c0_i32_6 : i32
    %9 = arith.extui %8 : i1 to i32
    %c0_i32_7 = arith.constant 0 : i32
    %10 = arith.cmpi ne, %9, %c0_i32_7 : i32
    scf.if %10 {
      %c0_8 = arith.constant 0 : index
      %c0_9 = arith.constant 0 : index
      %11 = vector.load %arg3[%c0_8, %c0_9] : memref<8x8xf32, #tpu.memory_space<vmem>>, vector<8x8xf32>
      %cst_10 = arith.constant 4.8828125E-4 : f32
      %12 = vector.broadcast %cst_10 : f32 to vector<8x8xf32>
      %13 = arith.mulf %11, %12 : vector<8x8xf32>
      %c0_11 = arith.constant 0 : index
      %c0_12 = arith.constant 0 : index
      %14 = vector.load %arg2[%c0_11, %c0_12] : memref<8x8xf32, #tpu.memory_space<vmem>>, vector<8x8xf32>
      tpu.vector_store %arg2[%c0_11, %c0_12], %13 {strides = array<i32>} : memref<8x8xf32, #tpu.memory_space<vmem>>, vector<8x8xf32>,
    } else {
    }
    return
  }
  func.func @transform_0(%arg0: i32) -> (i32, i32) {
    %c0_i32 = arith.constant 0 : i32
    %c0_i32_0 = arith.constant 0 : i32
    return %c0_i32, %arg0 : i32, i32
  }
  func.func @transform_1(%arg0: i32) -> (i32, i32) {
    %c0_i32 = arith.constant 0 : i32
    %c0_i32_0 = arith.constant 0 : i32
    %c0_i32_1 = arith.constant 0 : i32
    return %c0_i32, %c0_i32_0 : i32, i32
  }
}

</mosaic_0001>

<llo_original>
// kernel: tpu_custom_call.1
$region0: #{tpu_custom_call.1}
  #allocation0 [shape = 'u32[]', space=smem, size = 0x4, offset = 0x4, fixed_abs, tag = 'smem constant byte address 0x4 - core index']
  #allocation1 [shape = 'u32[144,128]{1,0:T(1,128)}', space=vmem, size = 0x12000, scoped, tag = 'internal scratch']
  #allocation2 [shape = 'f32[8,8]{1,0:T(8,128)}', space=vmem, size = 0x1000, scoped, tag = 'scratch operand']
  %s0 = inlined_call_operand.hbm [shape: f32[8,256], index: 0, kind: input, shape index: {}]
  %s1 = inlined_call_operand.hbm [shape: f32[8,8], index: 1, kind: output, shape index: {}]
  %s2 = sld [smem:[#allocation0]]
  $region26: #{tpu_custom_call.1} parent=0
    _
  %s4 = ssub.s32 1, %s2
  %s5 = scalar_select 0, %s4, %s2
  $region1: #{tpu_custom_call.1} parent=0
    #allocation3 [shape = 'u8[8192]{0}', space=vmem, size = 0x2000, scoped, tag = 'input window, operand 0, single buffered']
    #allocation4 [shape = 's32[1]{0}', space=sflag, size = 0x4, scoped, tag = 'scoped memory for tpu_custom_call.1']
    #allocation5 [shape = 's32[1]{0}', space=sflag, size = 0x4, scoped, tag = 'scoped memory for tpu_custom_call.1']
    #allocation6 [shape = 'u8[4096]{0}', space=vmem, size = 0x1000, scoped, tag = 'output window, operand 0, single buffered']
    %6 = vsyncpa [#allocation4], 0
    %7 = vsyncpa [#allocation5], 0
    // Predicated region
    $region2: #{tpu_custom_call.1} parent=1 // pred_check
      _
    $region3: #{tpu_custom_call.1} parent=1 // pred_check_branch
      %9 = sbr.rel (0) target = $region5
    $region4: #{tpu_custom_call.1} parent=1 // pred_region
      %s11 = ssub.s32 256, 256
      %12 = vsyncadd [#allocation4], %s11
      %s14 = sshll.u32 [#allocation3], 4
      %s15 = int_to_ptr.vmem [resolvable:$true] %s14
      %17 = dma.hbm_to_vmem [thread:$0]  %s0, 256, %s15, [#allocation4]
    $region5: #{tpu_custom_call.1} parent=1 // pred_fallthru
      _
    // Predicated region
    $region6: #{tpu_custom_call.1} parent=1 // pred_check
      _
    $region7: #{tpu_custom_call.1} parent=1 // pred_check_branch
      %19 = sbr.rel (0) target = $region9
    $region8: #{tpu_custom_call.1} parent=1 // pred_region
      %20 = dma.done [#allocation4], 256
    $region9: #{tpu_custom_call.1} parent=1 // pred_fallthru
      _
    %p21 = scmp.eq.s32.totalorder 0, 0
    // Predicated region
    $region10: #{tpu_custom_call.1} parent=1 // pred_check
      %p22 = pneg %p21
    $region11: #{tpu_custom_call.1} parent=1 // pred_check_branch
      %24 = sbr.rel (%p22) target = $region13
    $region12: #{tpu_custom_call.1} parent=1 // pred_region
      %vm25 = vcmask 64512
      %26 = vst.msk [vmem:[#allocation2] sm:$0xff] %vm25, 0.0
    $region13: #{tpu_custom_call.1} parent=1 // pred_fallthru
      _
    %v27 = vld [vmem:[#allocation3] sm:$0xff]
    %v28 = vld [vmem:[#allocation3 + $0x8] sm:$0xff]
    %v29 = vld [vmem:[#allocation2] sm:$0xff]
    %30 = vmatprep.subr.mxu0 0.0
    %31 = vmatpush1.xpose.msra.mxu0 0.0
    %32 = vmatprep.subr.mxu0 0.0
    %33 = vmatpush1.xpose.msra.mxu0 0.0
    %34 = vmatprep.subr.mxu0 0.0
    %35 = vmatpush1.xpose.msra.mxu0 0.0
    %36 = vmatprep.subr.mxu0 0.0
    %37 = vmatpush1.xpose.msra.mxu0 0.0
    %38 = vmatprep.subr.mxu0 0.0
    %39 = vmatpush1.xpose.msra.mxu0 0.0
    %40 = vmatprep.subr.mxu0 0.0
    %41 = vmatpush1.xpose.msra.mxu0 0.0
    %42 = vmatprep.subr.mxu0 0.0
    %43 = vmatpush1.xpose.msra.mxu0 0.0
    %44 = vmatprep.subr.mxu0 0.0
    %45 = vmatpush1.xpose.msra.mxu0 0.0
    %46 = vmatprep.subr.mxu0 0.0
    %47 = vmatpush1.xpose.msra.mxu0 0.0
    %48 = vmatprep.subr.mxu0 0.0
    %49 = vmatpush1.xpose.msra.mxu0 0.0
    %50 = vmatprep.subr.mxu0 0.0
    %51 = vmatpush1.xpose.msra.mxu0 0.0
    %52 = vmatprep.subr.mxu0 0.0
    %53 = vmatpush1.xpose.msra.mxu0 0.0
    %54 = vmatprep.subr.mxu0 0.0
    %55 = vmatpush1.xpose.msra.mxu0 0.0
    %56 = vmatprep.subr.mxu0 0.0
    %57 = vmatpush1.xpose.msra.mxu0 0.0
    %58 = vmatprep.subr.mxu0 0.0
    %59 = vmatpush1.xpose.msra.mxu0 0.0
    %60 = vmatprep.subr.mxu0 %v28
    %61 = vmatpush1.xpose.msra.mxu0 %v27
    %62 = vmatprep.subr.mxu0 0.0
    %63 = vmatpush2.xpose.msra.mxu0 0.0
    %64 = vmatprep.subr.mxu0 0.0
    %65 = vmatpush2.xpose.msra.mxu0 0.0
    %66 = vmatprep.subr.mxu0 0.0
    %67 = vmatpush2.xpose.msra.mxu0 0.0
    %68 = vmatprep.subr.mxu0 0.0
    %69 = vmatpush2.xpose.msra.mxu0 0.0
    %70 = vmatprep.subr.mxu0 0.0
    %71 = vmatpush2.xpose.msra.mxu0 0.0
    %72 = vmatprep.subr.mxu0 0.0
    %73 = vmatpush2.xpose.msra.mxu0 0.0
    %74 = vmatprep.subr.mxu0 0.0
    %75 = vmatpush2.xpose.msra.mxu0 0.0
    %76 = vmatprep.subr.mxu0 0.0
    %77 = vmatpush2.xpose.msra.mxu0 0.0
    %78 = vmatprep.subr.mxu0 0.0
    %79 = vmatpush2.xpose.msra.mxu0 0.0
    %80 = vmatprep.subr.mxu0 0.0
    %81 = vmatpush2.xpose.msra.mxu0 0.0
    %82 = vmatprep.subr.mxu0 0.0
    %83 = vmatpush2.xpose.msra.mxu0 0.0
    %84 = vmatprep.subr.mxu0 0.0
    %85 = vmatpush2.xpose.msra.mxu0 0.0
    %86 = vmatprep.subr.mxu0 0.0
    %87 = vmatpush2.xpose.msra.mxu0 0.0
    %88 = vmatprep.subr.mxu0 0.0
    %89 = vmatpush2.xpose.msra.mxu0 0.0
    %90 = vmatprep.subr.mxu0 0.0
    %91 = vmatpush2.xpose.msra.mxu0 0.0
    %92 = vmatprep.subr.mxu0 0.0
    %93 = vmatpush2.xpose.msra.mxu0 0.0
    %94 = vmatprep.mubr.f32.mxu0 %v28
    %95 = vmatmul.mubr.f32.gmra.mxu0 %v27
    %v96 = vpop.f32.mrf.mxu0
    %v97 = vadd.f32 0.0, %v96
    %v98 = vpop.f32.mrf.mxu0
    %99 = vdwg.mxu0
    %v100 = vadd.f32 %v29, %v97
    %vm101 = vcmask 64512
    %102 = vst.msk [vmem:[#allocation2] sm:$0xff] %vm101, %v100
    // Predicated region
    $region14: #{tpu_custom_call.1} parent=1 // pred_check
      %p103 = pneg %p21
    $region15: #{tpu_custom_call.1} parent=1 // pred_check_branch
      %105 = sbr.rel (%p103) target = $region17
    $region16: #{tpu_custom_call.1} parent=1 // pred_region
      %v106 = vld [vmem:[#allocation2] sm:$0xff]
      %v107 = vmul.f32 %v106, 0.00048828125
      %108 = vst.msk [vmem:[#allocation6] sm:$0xff] %vm101, %v107
    $region17: #{tpu_custom_call.1} parent=1 // pred_fallthru
      _
    // Predicated region
    $region18: #{tpu_custom_call.1} parent=1 // pred_check
      _
    $region19: #{tpu_custom_call.1} parent=1 // pred_check_branch
      %110 = sbr.rel (0) target = $region21
    $region20: #{tpu_custom_call.1} parent=1 // pred_region
      %s112 = ssub.s32 128, 128
      %113 = vsyncadd [#allocation5], %s112
      %s115 = sshll.u32 [#allocation6], 4
      %s116 = int_to_ptr.vmem [resolvable:$true] %s115
      %118 = dma.vmem_to_hbm [thread:$0]  %s116, 128, %s1, [#allocation5]
    $region21: #{tpu_custom_call.1} parent=1 // pred_fallthru
      _
    // Predicated region
    $region22: #{tpu_custom_call.1} parent=1 // pred_check
      _
    $region23: #{tpu_custom_call.1} parent=1 // pred_check_branch
      %120 = sbr.rel (0) target = $region25
    $region24: #{tpu_custom_call.1} parent=1 // pred_region
      %121 = dma.done [#allocation5], 128
    $region25: #{tpu_custom_call.1} parent=1 // pred_fallthru
      _
    %122 = vsyncpa [#allocation4], 1
    %123 = vsyncpa [#allocation5], 1

</llo_original>
